<compile_context>
chip_gen: v7x
topology: tpu7x:2x2x1
jax: 0.10.0
libtpu: 0.0.40
codegen_flags: <defaults>
</compile_context>

<pallas_src>
import functools

import jax
import jax.numpy as jnp
from jax.experimental import pallas as pl
from jax.experimental.pallas import tpu as pltpu


def _round_up(x: int, m: int) -> int:
    return ((x + m - 1) // m) * m


def _cdiv(a: int, b: int) -> int:
    return (a + b - 1) // b


def _gegenbauer_kan_kernel(x_ref, coeffs_ref, bias_ref, o_ref, *,
                           degree: int, alpha: float, in_dims: int):
    """x_ref: (TB, I); coeffs_ref: (degree*I, O_pad); bias_ref: (1, O_pad) f32;
    o_ref: (TB, O_pad)."""
    xt = jnp.tanh(x_ref[...].astype(jnp.float32))              # (TB, I), f32 VPU/EUP
    cdt = coeffs_ref.dtype

    # Degree-1 term plus the hoisted C_0 bias seed the f32 accumulator.
    c_prev = jnp.ones_like(xt)                                  # C_0
    c_cur = (2.0 * alpha) * xt                                  # C_1
    acc = bias_ref[...].astype(jnp.float32) + jnp.dot(
        c_cur.astype(cdt), coeffs_ref[0:in_dims, :],
        preferred_element_type=jnp.float32)                     # (TB, O_pad)

    # Interleave the VPU recurrence with per-degree MXU accumulation: only two
    # recurrence terms (+acc) are live, no (TB, D*I) concat is materialized.
    for n in range(1, degree):
        c_next = ((2.0 * (n + alpha)) * xt * c_cur
                  - (n + 2.0 * alpha - 1.0) * c_prev) * (1.0 / (n + 1.0))
        c_prev, c_cur = c_cur, c_next
        acc = acc + jnp.dot(
            c_cur.astype(cdt), coeffs_ref[n * in_dims:(n + 1) * in_dims, :],
            preferred_element_type=jnp.float32)

    o_ref[...] = acc.astype(o_ref.dtype)


def gegenbauer_kan_layer(x, coeffs_iod, *, degree: int, alpha: float = 1.0,
                         batch_tile: int = 2048):
    """x: (..., I) -> (B, O) with B = prod(leading dims).  coeffs_iod: (I, O, degree+1)."""
    in_dims, out_dims, dp1 = coeffs_iod.shape
    assert dp1 == degree + 1
    assert degree >= 1, "degree == 0 degenerates to a constant bias"

    x2 = x.reshape(-1, in_dims)
    batch = x2.shape[0]

    # C_0 contribution (ones @ coeffs[:, :, 0]) hoisted into a (1, O) f32 bias.
    bias = jnp.sum(coeffs_iod[:, :, 0].astype(jnp.float32), axis=0, keepdims=True)

    # Degrees 1..D stacked degree-major along the reduction axis: (D*I, O),
    # matching the per-degree static slices taken inside the kernel.
    coeffs_stacked = jnp.transpose(coeffs_iod[:, :, 1:], (2, 0, 1)).reshape(
        degree * in_dims, out_dims)

    # Lane-dense output: pad O to a multiple of 128 (unmasked vst, full MXU N
    # tiles); padding is sliced off after the call.
    o_pad = _round_up(out_dims, 128)
    if o_pad != out_dims:
        coeffs_stacked = jnp.pad(coeffs_stacked, ((0, 0), (0, o_pad - out_dims)))
        bias = jnp.pad(bias, ((0, 0), (0, o_pad - out_dims)))

    # Large batch tile (multiple of 8 sublanes) to amortize the ~0.35us/step
    # grid overhead, but keep >=2 grid steps when possible so the "parallel"
    # axis can shard across v7x's two TensorCores.
    tb = min(batch_tile, _round_up(batch, 8))
    if batch > 8 and _cdiv(batch, tb) < 2:
        tb = _round_up(_cdiv(batch, 2), 8)
    grid = (_cdiv(batch, tb),)

    # Temp-inclusive VMEM budget in the real dtypes.
    x_bytes = jnp.dtype(x2.dtype).itemsize
    c_bytes = jnp.dtype(coeffs_stacked.dtype).itemsize
    o_bytes = jnp.dtype(x.dtype).itemsize
    est_bytes = (
        2 * tb * in_dims * x_bytes              # double-buffered x tiles
        + 2 * tb * o_pad * o_bytes              # double-buffered output tiles
        + 2 * degree * in_dims * o_pad * c_bytes  # resident coeffs (dbl-buffered)
        + 2 * o_pad * 4                         # bias
        + 5 * tb * in_dims * 4                  # xt + recurrence terms + cast term
        + tb * o_pad * 4                        # f32 accumulator
        + (2 << 20))                            # slack
    try:
        info = pltpu.get_tpu_info()
        phys_vmem = int(getattr(info, "vmem_capacity_bytes", 64 * 1024 * 1024))
    except Exception:
        phys_vmem = 64 * 1024 * 1024            # conservative (v7x per-TC)
    vmem_limit = int(min(int(phys_vmem * 0.9),
                         max(est_bytes, 32 * 1024 * 1024)))

    kernel = functools.partial(_gegenbauer_kan_kernel, degree=degree,
                               alpha=float(alpha), in_dims=in_dims)

    out_padded = pl.pallas_call(
        kernel,
        out_shape=jax.ShapeDtypeStruct((batch, o_pad), x.dtype),
        grid_spec=pl.GridSpec(
            grid=grid,
            in_specs=[
                pl.BlockSpec((tb, in_dims), lambda b: (b, 0)),
                pl.BlockSpec((degree * in_dims, o_pad), lambda b: (0, 0)),
                pl.BlockSpec((1, o_pad), lambda b: (0, 0)),
            ],
            out_specs=pl.BlockSpec((tb, o_pad), lambda b: (b, 0)),
        ),
        compiler_params=pltpu.CompilerParams(
            dimension_semantics=("parallel",),
            vmem_limit_bytes=vmem_limit),
    )(x2, coeffs_stacked, bias)

    if o_pad != out_dims:
        out_padded = out_padded[:, :out_dims]
    return out_padded


def _reference_forward(x, coeffs_iod, *, degree: int, alpha: float):
    """Pure-JAX reference matching the PyTorch GegenbauerKANLayer.forward."""
    in_dims = coeffs_iod.shape[0]
    xt = jnp.tanh(x.reshape(-1, in_dims).astype(jnp.float32))
    batch = xt.shape[0]
    geg = [jnp.ones((batch, in_dims), jnp.float32)]
    if degree > 0:
        geg.append(2.0 * alpha * xt)
    for n in range(1, degree):
        term1 = 2.0 * (n + alpha) * xt * geg[n]
        term2 = (n + 2.0 * alpha - 1.0) * geg[n - 1]
        geg.append((term1 - term2) / (n + 1.0))
    basis = jnp.stack(geg, axis=-1)                             # (B, I, D+1)
    return jnp.einsum('bid,iod->bo', basis, coeffs_iod.astype(jnp.float32))


if __name__ == "__main__":
    key = jax.random.PRNGKey(0)
    degree = 3
    alpha = 1.0
    input_dims = 16
    output_dims = 32
    batch, seq = 4, 8                      # x.view(-1, I) -> B = 32 rows

    k_c, k_x = jax.random.split(key)
    std = 1.0 / (input_dims * (degree + 1))
    coeffs = jax.random.normal(
        k_c, (input_dims, output_dims, degree + 1), dtype=jnp.float32) * std
    x = jax.random.normal(k_x, (batch, seq, input_dims), dtype=jnp.float32)

    fwd = jax.jit(functools.partial(gegenbauer_kan_layer,
                                    degree=degree, alpha=alpha))
    out = jax.block_until_ready(fwd(x, coeffs))

    ref = _reference_forward(x, coeffs, degree=degree, alpha=alpha)
    assert out.shape == (batch * seq, output_dims)
    assert jnp.allclose(out, ref, atol=1e-5, rtol=1e-4), "mismatch vs reference"

    print("KERNEL_OK")
</pallas_src>

<mosaic_0001>
module attributes {stable_mosaic.version = 11 : i64} {
  func.func @_gegenbauer_kan_kernel(%arg0: i32, %arg1: memref<16x16xf32, #tpu.memory_space<vmem>>, %arg2: memref<48x128xf32, #tpu.memory_space<vmem>>, %arg3: memref<1x128xf32, #tpu.memory_space<vmem>>, %arg4: memref<16x128xf32, #tpu.memory_space<vmem>>) attributes {dimension_semantics = [#tpu.dimension_semantics<parallel>], iteration_bounds = array<i64: 2>, scalar_prefetch = 0 : i64, scratch_operands = 0 : i64, tpu.core_type = #tpu.core_type<tc>, window_params = [{transform_indices = @transform_0, window_bounds = array<i64: 16, 16>}, {pipeline_mode = #tpu.pipeline_mode<synchronous>, transform_indices = @transform_1, window_bounds = array<i64: 48, 128>}, {pipeline_mode = #tpu.pipeline_mode<synchronous>, transform_indices = @transform_2, window_bounds = array<i64: 1, 128>}, {transform_indices = @transform_3, window_bounds = array<i64: 16, 128>}]} {
    %c0 = arith.constant 0 : index
    %c0_0 = arith.constant 0 : index
    %0 = vector.load %arg1[%c0, %c0_0] : memref<16x16xf32, #tpu.memory_space<vmem>>, vector<16x16xf32>
    %1 = math.tanh %0 : vector<16x16xf32>
    %cst = arith.constant 1.000000e+00 : f32
    %2 = vector.broadcast %cst : f32 to vector<16x16xf32>
    %cst_1 = arith.constant 2.000000e+00 : f32
    %3 = vector.broadcast %cst_1 : f32 to vector<16x16xf32>
    %4 = arith.mulf %3, %1 : vector<16x16xf32>
    %c0_2 = arith.constant 0 : index
    %c0_3 = arith.constant 0 : index
    %5 = vector.load %arg3[%c0_2, %c0_3] : memref<1x128xf32, #tpu.memory_space<vmem>>, vector<1x128xf32>
    %c0_4 = arith.constant 0 : index
    %c0_5 = arith.constant 0 : index
    %6 = vector.load %arg2[%c0_4, %c0_5] : memref<48x128xf32, #tpu.memory_space<vmem>>, vector<16x128xf32>
    %cst_6 = arith.constant dense<0.000000e+00> : vector<16x128xf32>
    %7 = tpu.matmul %4, %6, %cst_6 {dimension_numbers = #tpu.dot_dimension_numbers<[1], [0], [0], [1], [0, 0, 1, 1], [], []>} : vector<16x16xf32>, vector<16x128xf32>, vector<16x128xf32> -> vector<16x128xf32>
    %8 = vector.broadcast %5 : vector<1x128xf32> to vector<16x128xf32>
    %9 = arith.addf %8, %7 : vector<16x128xf32>
    %cst_7 = arith.constant 4.000000e+00 : f32
    %10 = vector.broadcast %cst_7 : f32 to vector<16x16xf32>
    %11 = arith.mulf %10, %1 : vector<16x16xf32>
    %12 = arith.mulf %11, %4 : vector<16x16xf32>
    %cst_8 = arith.constant 2.000000e+00 : f32
    %13 = vector.broadcast %cst_8 : f32 to vector<16x16xf32>
    %14 = arith.mulf %13, %2 : vector<16x16xf32>
    %15 = arith.subf %12, %14 : vector<16x16xf32>
    %cst_9 = arith.constant 5.000000e-01 : f32
    %16 = vector.broadcast %cst_9 : f32 to vector<16x16xf32>
    %17 = arith.mulf %15, %16 : vector<16x16xf32>
    %c16 = arith.constant 16 : index
    %c0_10 = arith.constant 0 : index
    %18 = vector.load %arg2[%c16, %c0_10] : memref<48x128xf32, #tpu.memory_space<vmem>>, vector<16x128xf32>
    %cst_11 = arith.constant dense<0.000000e+00> : vector<16x128xf32>
    %19 = tpu.matmul %17, %18, %cst_11 {dimension_numbers = #tpu.dot_dimension_numbers<[1], [0], [0], [1], [0, 0, 1, 1], [], []>} : vector<16x16xf32>, vector<16x128xf32>, vector<16x128xf32> -> vector<16x128xf32>
    %20 = arith.addf %9, %19 : vector<16x128xf32>
    %cst_12 = arith.constant 6.000000e+00 : f32
    %21 = vector.broadcast %cst_12 : f32 to vector<16x16xf32>
    %22 = arith.mulf %21, %1 : vector<16x16xf32>
    %23 = arith.mulf %22, %17 : vector<16x16xf32>
    %cst_13 = arith.constant 3.000000e+00 : f32
    %24 = vector.broadcast %cst_13 : f32 to vector<16x16xf32>
    %25 = arith.mulf %24, %4 : vector<16x16xf32>
    %26 = arith.subf %23, %25 : vector<16x16xf32>
    %cst_14 = arith.constant 0.333333343 : f32
    %27 = vector.broadcast %cst_14 : f32 to vector<16x16xf32>
    %28 = arith.mulf %26, %27 : vector<16x16xf32>
    %c32 = arith.constant 32 : index
    %c0_15 = arith.constant 0 : index
    %29 = vector.load %arg2[%c32, %c0_15] : memref<48x128xf32, #tpu.memory_space<vmem>>, vector<16x128xf32>
    %cst_16 = arith.constant dense<0.000000e+00> : vector<16x128xf32>
    %30 = tpu.matmul %28, %29, %cst_16 {dimension_numbers = #tpu.dot_dimension_numbers<[1], [0], [0], [1], [0, 0, 1, 1], [], []>} : vector<16x16xf32>, vector<16x128xf32>, vector<16x128xf32> -> vector<16x128xf32>
    %31 = arith.addf %20, %30 : vector<16x128xf32>
    %c0_17 = arith.constant 0 : index
    %c0_18 = arith.constant 0 : index
    %32 = vector.load %arg4[%c0_17, %c0_18] : memref<16x128xf32, #tpu.memory_space<vmem>>, vector<16x128xf32>
    tpu.vector_store %arg4[%c0_17, %c0_18], %31 {strides = array<i32>} : memref<16x128xf32, #tpu.memory_space<vmem>>, vector<16x128xf32>,
    return
  }
  func.func @transform_0(%arg0: i32) -> (i32, i32) {
    %c0_i32 = arith.constant 0 : i32
    %c0_i32_0 = arith.constant 0 : i32
    return %arg0, %c0_i32 : i32, i32
  }
  func.func @transform_1(%arg0: i32) -> (i32, i32) {
    %c0_i32 = arith.constant 0 : i32
    %c0_i32_0 = arith.constant 0 : i32
    %c0_i32_1 = arith.constant 0 : i32
    return %c0_i32, %c0_i32_0 : i32, i32
  }
  func.func @transform_2(%arg0: i32) -> (i32, i32) {
    %c0_i32 = arith.constant 0 : i32
    %c0_i32_0 = arith.constant 0 : i32
    %c0_i32_1 = arith.constant 0 : i32
    return %c0_i32, %c0_i32_0 : i32, i32
  }
  func.func @transform_3(%arg0: i32) -> (i32, i32) {
    %c0_i32 = arith.constant 0 : i32
    %c0_i32_0 = arith.constant 0 : i32
    return %arg0, %c0_i32 : i32, i32
  }
}

</mosaic_0001>

<llo_original>
// kernel: gegenbauer_kan_layer.1
$region0: #{gegenbauer_kan_layer.1}
  #allocation0 [shape = 'u32[]', space=smem, size = 0x4, offset = 0x4, fixed_abs, tag = 'smem constant byte address 0x4 - core index']
  #allocation1 [shape = 'u32[144,128]{1,0:T(1,128)}', space=vmem, size = 0x12000, scoped, tag = 'internal scratch']
  %s0 = inlined_call_operand.vmem [shape: f32[32,16], index: 0, kind: input, shape index: {}]
  %s1 = inlined_call_operand.vmem [shape: f32[48,128], index: 1, kind: input, shape index: {}]
  %s2 = inlined_call_operand.vmem [shape: f32[1,128], index: 2, kind: input, shape index: {}]
  %s3 = inlined_call_operand.hbm [shape: f32[32,128], index: 3, kind: output, shape index: {}]
  %s4 = sld [smem:[#allocation0]]
  $region45: #{gegenbauer_kan_layer.1} parent=0
    _
  %s6 = ssub.s32 1, %s4
  %s7 = scalar_select 0, %s6, %s4
  $region1: #{gegenbauer_kan_layer.1} parent=0
    #allocation2 [shape = 'u8[16384]{0}', space=vmem, size = 0x4000, scoped, tag = 'output window, operand 0']
    #allocation3 [shape = 's32[2]{0}', space=sflag, size = 0x8, scoped, tag = 'scoped memory for gegenbauer_kan_layer.1']
    %8 = vsyncpa [#allocation3], 0
    %s9 = scalar_lea.sflag [#allocation3], 1
    %10 = vsyncpa %s9, 0
    loop: start=0, step=1, limit=4
    $region2: #{gegenbauer_kan_layer.1} parent=1 // loop_pre_header
      _
    $region3: #{gegenbauer_kan_layer.1} parent=1 // loop_header
      %s12 = sphi 0, %s16
      %p13 = scmp.ge.s32.totalorder %s12, 4
      %s22 = sphi 0, %s24
      %s25 = sphi 0, %s22
      %s26 = sphi 0, %s25
      %s42 = sphi 0, %s26
      %s46 = sphi 0, %s46
      %s48 = sphi 0, %s46
      %s49 = sphi 0, %s48
      %s63 = sphi 0, %s49
      %s67 = sphi 0, %s67
      %s69 = sphi 0, %s67
      %s70 = sphi 0, %s69
      %s84 = sphi 0, %s70
      %s90 = sphi 0, %s92
      %s93 = sphi 0, %s90
      %s94 = sphi 0, %s93
      %s110 = sphi 0, %s94
    $region4: #{gegenbauer_kan_layer.1} parent=1 // loop_header_branch
      %15 = sbr.rel (%p13) target = $region8
    $region5: #{gegenbauer_kan_layer.1} parent=1 // loop_body
      %s17 = ssub.s32 %s12, 1
      %s18 = ssub.s32 %s12, 2
      %s19 = sadd.s32 %s12, 1
      %s20 = ssub.s32 %s12, %s19
      %p21 = scmp.eq.s32.totalorder %s20, 0
      %s23 = sadd.s32 %s22, 1
      %s24 = scalar_select %p21, %s22, %s23
      %p27 = pneg %p21
      %p28 = scmp.eq.s32.totalorder %s12, 1
      %p29 = por %p27, %p28
      %p30 = scmp.ne.s32.totalorder %s22, %s25
      %p31 = scmp.eq.s32.totalorder %s12, 0
      %p32 = por %p30, %p31
      %p33 = scmp.ne.s32.totalorder %s22, %s25
      %p34 = scmp.eq.s32.totalorder %s17, 1
      %p35 = por %p33, %p34
      %p36 = scmp.ne.s32.totalorder %s25, %s26
      %p37 = scmp.eq.s32.totalorder %s17, 0
      %p38 = por %p36, %p37
      %p39 = scmp.ne.s32.totalorder %s25, %s26
      %p40 = scmp.eq.s32.totalorder %s18, 1
      %p41 = por %p39, %p40
      %p43 = scmp.ne.s32.totalorder %s26, %s42
      %p44 = scmp.eq.s32.totalorder %s18, 0
      %p45 = por %p43, %p44
      %s47 = sadd.s32 %s46, 1
      %p50 = scmp.eq.s32.totalorder %s12, 1
      %p51 = scmp.ne.s32.totalorder %s46, %s48
      %p52 = scmp.eq.s32.totalorder %s12, 0
      %p53 = por %p51, %p52
      %p54 = scmp.ne.s32.totalorder %s46, %s48
      %p55 = scmp.eq.s32.totalorder %s17, 1
      %p56 = por %p54, %p55
      %p57 = scmp.ne.s32.totalorder %s48, %s49
      %p58 = scmp.eq.s32.totalorder %s17, 0
      %p59 = por %p57, %p58
      %p60 = scmp.ne.s32.totalorder %s48, %s49
      %p61 = scmp.eq.s32.totalorder %s18, 1
      %p62 = por %p60, %p61
      %p64 = scmp.ne.s32.totalorder %s49, %s63
      %p65 = scmp.eq.s32.totalorder %s18, 0
      %p66 = por %p64, %p65
      %s68 = sadd.s32 %s67, 1
      %p71 = scmp.eq.s32.totalorder %s12, 1
      %p72 = scmp.ne.s32.totalorder %s67, %s69
      %p73 = scmp.eq.s32.totalorder %s12, 0
      %p74 = por %p72, %p73
      %p75 = scmp.ne.s32.totalorder %s67, %s69
      %p76 = scmp.eq.s32.totalorder %s17, 1
      %p77 = por %p75, %p76
      %p78 = scmp.ne.s32.totalorder %s69, %s70
      %p79 = scmp.eq.s32.totalorder %s17, 0
      %p80 = por %p78, %p79
      %p81 = scmp.ne.s32.totalorder %s69, %s70
      %p82 = scmp.eq.s32.totalorder %s18, 1
      %p83 = por %p81, %p82
      %p85 = scmp.ne.s32.totalorder %s70, %s84
      %p86 = scmp.eq.s32.totalorder %s18, 0
      %p87 = por %p85, %p86
      %s88 = ssub.s32 %s12, %s19
      %p89 = scmp.eq.s32.totalorder %s88, 0
      %s91 = sadd.s32 %s90, 1
      %s92 = scalar_select %p89, %s90, %s91
      %p95 = pneg %p89
      %p96 = scmp.eq.s32.totalorder %s12, 1
      %p97 = por %p95, %p96
      %p98 = scmp.ne.s32.totalorder %s90, %s93
      %p99 = scmp.eq.s32.totalorder %s12, 0
      %p100 = por %p98, %p99
      %p101 = scmp.ne.s32.totalorder %s90, %s93
      %p102 = scmp.eq.s32.totalorder %s17, 1
      %p103 = por %p101, %p102
      %p104 = scmp.ne.s32.totalorder %s93, %s94
      %p105 = scmp.eq.s32.totalorder %s17, 0
      %p106 = por %p104, %p105
      %p107 = scmp.ne.s32.totalorder %s93, %s94
      %p108 = scmp.eq.s32.totalorder %s18, 1
      %p109 = por %p107, %p108
      %p111 = scmp.ne.s32.totalorder %s94, %s110
      %p112 = scmp.eq.s32.totalorder %s18, 0
      %p113 = por %p111, %p112
      %p114 = scmp.le.s32.totalorder 1, %s12
      %p115 = scmp.lt.s32.totalorder %s12, 3
      %p116 = pnand %p114, %p115
      %p117 = pneg %p116
      // Predicated region
      $region9: #{gegenbauer_kan_layer.1} parent=5 // pred_check
        _
      $region10: #{gegenbauer_kan_layer.1} parent=5 // pred_check_branch
        %119 = sbr.rel (%p116) target = $region12
      $region11: #{gegenbauer_kan_layer.1} parent=5 // pred_region
        %s120 = ssub.s32 %s12, 1
        // Predicated region
        $region13: #{gegenbauer_kan_layer.1} parent=11 // pred_check
          %p121 = pneg %p59
        $region14: #{gegenbauer_kan_layer.1} parent=11 // pred_check_branch
          %123 = sbr.rel (%p121) target = $region16
        $region15: #{gegenbauer_kan_layer.1} parent=11 // pred_region
          _
        $region16: #{gegenbauer_kan_layer.1} parent=11 // pred_fallthru
          _
        // Predicated region
        $region17: #{gegenbauer_kan_layer.1} parent=11 // pred_check
          %p124 = pneg %p80
        $region18: #{gegenbauer_kan_layer.1} parent=11 // pred_check_branch
          %126 = sbr.rel (%p124) target = $region20
        $region19: #{gegenbauer_kan_layer.1} parent=11 // pred_region
          _
        $region20: #{gegenbauer_kan_layer.1} parent=11 // pred_fallthru
          _
      $region12: #{gegenbauer_kan_layer.1} parent=5 // pred_fallthru
        _
      %p127 = scmp.lt.s32.totalorder %s12, 2
      // Predicated region
      $region21: #{gegenbauer_kan_layer.1} parent=5 // pred_check
        %p128 = pneg %p127
      $region22: #{gegenbauer_kan_layer.1} parent=5 // pred_check_branch
        %130 = sbr.rel (%p128) target = $region24
      $region23: #{gegenbauer_kan_layer.1} parent=5 // pred_region
        // Predicated region
        $region25: #{gegenbauer_kan_layer.1} parent=23 // pred_check
          %p131 = pneg %p32
        $region26: #{gegenbauer_kan_layer.1} parent=23 // pred_check_branch
          %133 = sbr.rel (%p131) target = $region28
        $region27: #{gegenbauer_kan_layer.1} parent=23 // pred_region
          %s134 = smul.u32 2, %s12
          %p135 = scmp.lt.s32.totalorder %s134, 3
          %s136 = scalar_select %p135, %s134, 3
          %s137 = smul.addr %s136, 8
          %s138 = scalar_lea.vmem %s0, %s137
          %s139 = smul.u32 2, %s12
        $region28: #{gegenbauer_kan_layer.1} parent=23 // pred_fallthru
          _
      $region24: #{gegenbauer_kan_layer.1} parent=5 // pred_fallthru
        _
      %p140 = scmp.le.s32.totalorder 1, %s12
      %p141 = scmp.lt.s32.totalorder %s12, 3
      %p142 = pnand %p140, %p141
      %p143 = pneg %p142
      // Predicated region
      $region29: #{gegenbauer_kan_layer.1} parent=5 // pred_check
        _
      $region30: #{gegenbauer_kan_layer.1} parent=5 // pred_check_branch
        %145 = sbr.rel (%p142) target = $region32
      $region31: #{gegenbauer_kan_layer.1} parent=5 // pred_region
        %s146 = ssub.s32 %s12, 1
        %s147 = smul.u32 2, %s17
        %p148 = scmp.lt.s32.totalorder %s147, 3
        %s149 = scalar_select %p148, %s147, 3
        %s150 = smul.addr %s149, 8
        %s151 = scalar_lea.vmem %s0, %s150
        %p152 = pneg %p38
        %p153 = pneg %p35
        %p154 = pneg %p59
        %p155 = pneg %p56
        %p156 = pneg %p80
        %p157 = pneg %p77
        %p158 = pneg %p106
        %p159 = pneg %p103
        %s160 = sand.u32 %s93, 1
        %s161 = scalar_lea.sflag [#allocation3], %s160
        %s162 = sand.u32 %s93, 1
        %s163 = smul.addr %s162, 16
        %s164 = scalar_lea.vmem [#allocation2], %s163
        %s165 = smul.u32 2, %s17
        %p166 = scmp.lt.s32.totalorder %s165, 3
        %s167 = scalar_select %p166, %s165, 3
        %s168 = smul.addr %s167, 8
        %s169 = scalar_lea.vmem %s0, %s168
        %s170 = smul.u32 2, %s17
        %s171 = smul.u32 2, %s17
        %v172 = vld [vmem:[%s169] sm:$0xff]
        %v173 = vld [vmem:[%s169 + $0x8] sm:$0xff]
        %v174 = vtanh.pop %v172
        %v175 = vtanh.pop %v173
        %v176 = vmul.f32 %v174, 2.0
        %v177 = vmul.f32 %v175, 2.0
        %v178 = vld [vmem:[%s2] sm:$0x1]
        %v179 = vld [vmem:[%s1] sm:$0xff]
        %v180 = vld [vmem:[%s1 + $0x8] sm:$0xff]
        %vm181 = vcmask 130048
        %v183 = vsel %vm181, %v176, 0
        %v186 = vsel %vm181, %v177, 0
        %188 = vmatprep.subr.mxu0 0.0
        %189 = vmatpush1.msra.mxu0 %v179
        %190 = vmatprep.subr.mxu0 0.0
        %191 = vmatpush1.msra.mxu0 %v180
        %192 = vmatprep.subr.mxu0 0.0
        %193 = vmatpush1.msra.mxu0 0.0
        %194 = vmatprep.subr.mxu0 0.0
        %195 = vmatpush1.msra.mxu0 0.0
        %196 = vmatprep.subr.mxu0 0.0
        %197 = vmatpush1.msra.mxu0 0.0
        %198 = vmatprep.subr.mxu0 0.0
        %199 = vmatpush1.msra.mxu0 0.0
        %200 = vmatprep.subr.mxu0 0.0
        %201 = vmatpush1.msra.mxu0 0.0
        %202 = vmatprep.subr.mxu0 0.0
        %203 = vmatpush1.msra.mxu0 0.0
        %204 = vmatprep.subr.mxu0 0.0
        %205 = vmatpush1.msra.mxu0 0.0
        %206 = vmatprep.subr.mxu0 0.0
        %207 = vmatpush1.msra.mxu0 0.0
        %208 = vmatprep.subr.mxu0 0.0
        %209 = vmatpush1.msra.mxu0 0.0
        %210 = vmatprep.subr.mxu0 0.0
        %211 = vmatpush1.msra.mxu0 0.0
        %212 = vmatprep.subr.mxu0 0.0
        %213 = vmatpush1.msra.mxu0 0.0
        %214 = vmatprep.subr.mxu0 0.0
        %215 = vmatpush1.msra.mxu0 0.0
        %216 = vmatprep.subr.mxu0 0.0
        %217 = vmatpush1.msra.mxu0 0.0
        %218 = vmatprep.subr.mxu0 0.0
        %219 = vmatpush1.msra.mxu0 0.0
        %220 = vmatprep.subr.mxu0 0.0
        %221 = vmatpush1.msra.mxu0 0.0
        %222 = vmatprep.subr.mxu0 0.0
        %223 = vmatpush1.msra.mxu0 0.0
        %224 = vmatprep.subr.mxu0 0.0
        %225 = vmatpush1.msra.mxu0 0.0
        %226 = vmatprep.subr.mxu0 0.0
        %227 = vmatpush1.msra.mxu0 0.0
        %228 = vmatprep.subr.mxu0 0.0
        %229 = vmatpush1.msra.mxu0 0.0
        %230 = vmatprep.subr.mxu0 0.0
        %231 = vmatpush1.msra.mxu0 0.0
        %232 = vmatprep.subr.mxu0 0.0
        %233 = vmatpush1.msra.mxu0 0.0
        %234 = vmatprep.subr.mxu0 0.0
        %235 = vmatpush1.msra.mxu0 0.0
        %236 = vmatprep.subr.mxu0 0.0
        %237 = vmatpush1.msra.mxu0 0.0
        %238 = vmatprep.subr.mxu0 0.0
        %239 = vmatpush1.msra.mxu0 0.0
        %240 = vmatprep.subr.mxu0 0.0
        %241 = vmatpush1.msra.mxu0 0.0
        %242 = vmatprep.subr.mxu0 0.0
        %243 = vmatpush1.msra.mxu0 0.0
        %244 = vmatprep.subr.mxu0 0.0
        %245 = vmatpush1.msra.mxu0 0.0
        %246 = vmatprep.subr.mxu0 0.0
        %247 = vmatpush1.msra.mxu0 0.0
        %248 = vmatprep.subr.mxu0 0.0
        %249 = vmatpush1.msra.mxu0 0.0
        %250 = vmatprep.subr.mxu0 0.0
        %251 = vmatpush1.msra.mxu0 0.0
        %252 = vmatprep.mubr.f32.mxu0 0.0
        %253 = vmatmul.mubr.f32.gmra.mrb[0].mxu0 %v183
        %v254 = vpop.f32.mrb[0].mxu0
        %v255 = vadd.f32 0.0, %v254
        %v256 = vpop.f32.mrb[0].mxu0
        %257 = vmatprep.mubr.f32.mxu0 0.0
        %258 = vmatmul.mubr.f32.gmra.mrb[0].mxu0 %v186
        %v259 = vpop.f32.mrb[0].mxu0
        %v260 = vadd.f32 0.0, %v259
        %v261 = vpop.f32.mrb[0].mxu0
        %262 = vdwg.mxu0
        %v264 = vlaneseq
        %v265 = vshrl.u32 %v264, 7
        %v266 = vsub.s32 0, %v265
        %v267 = vrot.slane %v178, %v266
        %v269 = vadd.f32 %v267, %v255
        %v270 = vadd.f32 %v267, %v260
        %v271 = vmul.f32 %v174, 4.0
        %v272 = vmul.f32 %v175, 4.0
        %v273 = vmul.f32 %v271, %v176
        %v274 = vmul.f32 %v272, %v177
        %v275 = vsub.f32 %v273, 2.0
        %v276 = vsub.f32 %v274, 2.0
        %v277 = vmul.f32 %v275, 0.5
        %v278 = vmul.f32 %v276, 0.5
        %v279 = vld [vmem:[%s1 + $0x10] sm:$0xff]
        %v280 = vld [vmem:[%s1 + $0x18] sm:$0xff]
        %v282 = vsel %vm181, %v277, 0
        %v285 = vsel %vm181, %v278, 0
        %287 = vmatprep.subr.mxu0 0.0
        %288 = vmatpush1.msra.mxu0 %v279
        %289 = vmatprep.subr.mxu0 0.0
        %290 = vmatpush1.msra.mxu0 %v280
        %291 = vmatprep.subr.mxu0 0.0
        %292 = vmatpush1.msra.mxu0 0.0
        %293 = vmatprep.subr.mxu0 0.0
        %294 = vmatpush1.msra.mxu0 0.0
        %295 = vmatprep.subr.mxu0 0.0
        %296 = vmatpush1.msra.mxu0 0.0
        %297 = vmatprep.subr.mxu0 0.0
        %298 = vmatpush1.msra.mxu0 0.0
        %299 = vmatprep.subr.mxu0 0.0
        %300 = vmatpush1.msra.mxu0 0.0
        %301 = vmatprep.subr.mxu0 0.0
        %302 = vmatpush1.msra.mxu0 0.0
        %303 = vmatprep.subr.mxu0 0.0
        %304 = vmatpush1.msra.mxu0 0.0
        %305 = vmatprep.subr.mxu0 0.0
        %306 = vmatpush1.msra.mxu0 0.0
        %307 = vmatprep.subr.mxu0 0.0
        %308 = vmatpush1.msra.mxu0 0.0
        %309 = vmatprep.subr.mxu0 0.0
        %310 = vmatpush1.msra.mxu0 0.0
        %311 = vmatprep.subr.mxu0 0.0
        %312 = vmatpush1.msra.mxu0 0.0
        %313 = vmatprep.subr.mxu0 0.0
        %314 = vmatpush1.msra.mxu0 0.0
        %315 = vmatprep.subr.mxu0 0.0
        %316 = vmatpush1.msra.mxu0 0.0
        %317 = vmatprep.subr.mxu0 0.0
        %318 = vmatpush1.msra.mxu0 0.0
        %319 = vmatprep.subr.mxu0 0.0
        %320 = vmatpush1.msra.mxu0 0.0
        %321 = vmatprep.subr.mxu0 0.0
        %322 = vmatpush1.msra.mxu0 0.0
        %323 = vmatprep.subr.mxu0 0.0
        %324 = vmatpush1.msra.mxu0 0.0
        %325 = vmatprep.subr.mxu0 0.0
        %326 = vmatpush1.msra.mxu0 0.0
        %327 = vmatprep.subr.mxu0 0.0
        %328 = vmatpush1.msra.mxu0 0.0
        %329 = vmatprep.subr.mxu0 0.0
        %330 = vmatpush1.msra.mxu0 0.0
        %331 = vmatprep.subr.mxu0 0.0
        %332 = vmatpush1.msra.mxu0 0.0
        %333 = vmatprep.subr.mxu0 0.0
        %334 = vmatpush1.msra.mxu0 0.0
        %335 = vmatprep.subr.mxu0 0.0
        %336 = vmatpush1.msra.mxu0 0.0
        %337 = vmatprep.subr.mxu0 0.0
        %338 = vmatpush1.msra.mxu0 0.0
        %339 = vmatprep.subr.mxu0 0.0
        %340 = vmatpush1.msra.mxu0 0.0
        %341 = vmatprep.subr.mxu0 0.0
        %342 = vmatpush1.msra.mxu0 0.0
        %343 = vmatprep.subr.mxu0 0.0
        %344 = vmatpush1.msra.mxu0 0.0
        %345 = vmatprep.subr.mxu0 0.0
        %346 = vmatpush1.msra.mxu0 0.0
        %347 = vmatprep.subr.mxu0 0.0
        %348 = vmatpush1.msra.mxu0 0.0
        %349 = vmatprep.subr.mxu0 0.0
        %350 = vmatpush1.msra.mxu0 0.0
        %351 = vmatprep.mubr.f32.mxu0 0.0
        %352 = vmatmul.mubr.f32.gmra.mrb[0].mxu0 %v282
        %v353 = vpop.f32.mrb[0].mxu0
        %v354 = vadd.f32 0.0, %v353
        %v355 = vpop.f32.mrb[0].mxu0
        %356 = vmatprep.mubr.f32.mxu0 0.0
        %357 = vmatmul.mubr.f32.gmra.mrb[0].mxu0 %v285
        %v358 = vpop.f32.mrb[0].mxu0
        %v359 = vadd.f32 0.0, %v358
        %v360 = vpop.f32.mrb[0].mxu0
        %361 = vdwg.mxu0
        %v362 = vadd.f32 %v269, %v354
        %v363 = vadd.f32 %v270, %v359
        %v364 = vmul.f32 %v174, 6.0
        %v365 = vmul.f32 %v175, 6.0
        %v366 = vmul.f32 %v364, %v277
        %v367 = vmul.f32 %v365, %v278
        %v368 = vmul.f32 %v176, 3.0
        %v369 = vmul.f32 %v177, 3.0
        %v370 = vsub.f32 %v366, %v368
        %v371 = vsub.f32 %v367, %v369
        %v372 = vmul.f32 %v370, 0.33333334
        %v373 = vmul.f32 %v371, 0.33333334
        %v374 = vld [vmem:[%s1 + $0x20] sm:$0xff]
        %v375 = vld [vmem:[%s1 + $0x28] sm:$0xff]
        %v377 = vsel %vm181, %v372, 0
        %v380 = vsel %vm181, %v373, 0
        %382 = vmatprep.subr.mxu0 0.0
        %383 = vmatpush1.msra.mxu0 %v374
        %384 = vmatprep.subr.mxu0 0.0
        %385 = vmatpush1.msra.mxu0 %v375
        %386 = vmatprep.subr.mxu0 0.0
        %387 = vmatpush1.msra.mxu0 0.0
        %388 = vmatprep.subr.mxu0 0.0
        %389 = vmatpush1.msra.mxu0 0.0
        %390 = vmatprep.subr.mxu0 0.0
        %391 = vmatpush1.msra.mxu0 0.0
        %392 = vmatprep.subr.mxu0 0.0
        %393 = vmatpush1.msra.mxu0 0.0
        %394 = vmatprep.subr.mxu0 0.0
        %395 = vmatpush1.msra.mxu0 0.0
        %396 = vmatprep.subr.mxu0 0.0
        %397 = vmatpush1.msra.mxu0 0.0
        %398 = vmatprep.subr.mxu0 0.0
        %399 = vmatpush1.msra.mxu0 0.0
        %400 = vmatprep.subr.mxu0 0.0
        %401 = vmatpush1.msra.mxu0 0.0
        %402 = vmatprep.subr.mxu0 0.0
        %403 = vmatpush1.msra.mxu0 0.0
        %404 = vmatprep.subr.mxu0 0.0
        %405 = vmatpush1.msra.mxu0 0.0
        %406 = vmatprep.subr.mxu0 0.0
        %407 = vmatpush1.msra.mxu0 0.0
        %408 = vmatprep.subr.mxu0 0.0
        %409 = vmatpush1.msra.mxu0 0.0
        %410 = vmatprep.subr.mxu0 0.0
        %411 = vmatpush1.msra.mxu0 0.0
        %412 = vmatprep.subr.mxu0 0.0
        %413 = vmatpush1.msra.mxu0 0.0
        %414 = vmatprep.subr.mxu0 0.0
        %415 = vmatpush1.msra.mxu0 0.0
        %416 = vmatprep.subr.mxu0 0.0
        %417 = vmatpush1.msra.mxu0 0.0
        %418 = vmatprep.subr.mxu0 0.0
        %419 = vmatpush1.msra.mxu0 0.0
        %420 = vmatprep.subr.mxu0 0.0
        %421 = vmatpush1.msra.mxu0 0.0
        %422 = vmatprep.subr.mxu0 0.0
        %423 = vmatpush1.msra.mxu0 0.0
        %424 = vmatprep.subr.mxu0 0.0
        %425 = vmatpush1.msra.mxu0 0.0
        %426 = vmatprep.subr.mxu0 0.0
        %427 = vmatpush1.msra.mxu0 0.0
        %428 = vmatprep.subr.mxu0 0.0
        %429 = vmatpush1.msra.mxu0 0.0
        %430 = vmatprep.subr.mxu0 0.0
        %431 = vmatpush1.msra.mxu0 0.0
        %432 = vmatprep.subr.mxu0 0.0
        %433 = vmatpush1.msra.mxu0 0.0
        %434 = vmatprep.subr.mxu0 0.0
        %435 = vmatpush1.msra.mxu0 0.0
        %436 = vmatprep.subr.mxu0 0.0
        %437 = vmatpush1.msra.mxu0 0.0
        %438 = vmatprep.subr.mxu0 0.0
        %439 = vmatpush1.msra.mxu0 0.0
        %440 = vmatprep.subr.mxu0 0.0
        %441 = vmatpush1.msra.mxu0 0.0
        %442 = vmatprep.subr.mxu0 0.0
        %443 = vmatpush1.msra.mxu0 0.0
        %444 = vmatprep.subr.mxu0 0.0
        %445 = vmatpush1.msra.mxu0 0.0
        %446 = vmatprep.mubr.f32.mxu0 0.0
        %447 = vmatmul.mubr.f32.gmra.mrb[0].mxu0 %v377
        %v448 = vpop.f32.mrb[0].mxu0
        %v449 = vadd.f32 0.0, %v448
        %v450 = vpop.f32.mrb[0].mxu0
        %451 = vmatprep.mubr.f32.mxu0 0.0
        %452 = vmatmul.mubr.f32.gmra.mrb[0].mxu0 %v380
        %v453 = vpop.f32.mrb[0].mxu0
        %v454 = vadd.f32 0.0, %v453
        %v455 = vpop.f32.mrb[0].mxu0
        %456 = vdwg.mxu0
        %v457 = vadd.f32 %v362, %v449
        %v458 = vadd.f32 %v363, %v454
        %459 = vst [vmem:[%s164] sm:$0xff] %v457
        %460 = vst [vmem:[%s164 + $0x8] sm:$0xff] %v458
        %s461 = sand.u32 %s93, 1
        %s462 = scalar_lea.sflag [#allocation3], %s461
        %s463 = sand.u32 %s93, 1
        %s464 = smul.addr %s463, 16
        %s465 = scalar_lea.vmem [#allocation2], %s464
        // Predicated region
        $region33: #{gegenbauer_kan_layer.1} parent=31 // pred_check
          %p466 = pneg %p103
        $region34: #{gegenbauer_kan_layer.1} parent=31 // pred_check_branch
          %468 = sbr.rel (%p466) target = $region36
        $region35: #{gegenbauer_kan_layer.1} parent=31 // pred_region
          %s469 = smul.u32 2, %s17
          %s471 = ssub.s32 256, 256
          %472 = vsyncadd %s462, %s471
          %s473 = smul.addr %s469, 128
          %s474 = scalar_lea.hbm %s3, %s473
          %s475 = sshll.u32 %s465, 4
          %s476 = int_to_ptr.vmem [resolvable:$true] %s475
          %481 = dma.vmem_to_hbm [thread:$0]  %s476, 256, %s474, %s462, 128, 128, 8
        $region36: #{gegenbauer_kan_layer.1} parent=31 // pred_fallthru
          _
      $region32: #{gegenbauer_kan_layer.1} parent=5 // pred_fallthru
        _
      %p482 = scmp.le.s32.totalorder 2, %s12
      // Predicated region
      $region37: #{gegenbauer_kan_layer.1} parent=5 // pred_check
        %p483 = pneg %p482
      $region38: #{gegenbauer_kan_layer.1} parent=5 // pred_check_branch
        %485 = sbr.rel (%p483) target = $region40
      $region39: #{gegenbauer_kan_layer.1} parent=5 // pred_region
        %s486 = ssub.s32 %s12, 2
        // Predicated region
        $region41: #{gegenbauer_kan_layer.1} parent=39 // pred_check
          %p487 = pneg %p109
        $region42: #{gegenbauer_kan_layer.1} parent=39 // pred_check_branch
          %489 = sbr.rel (%p487) target = $region44
        $region43: #{gegenbauer_kan_layer.1} parent=39 // pred_region
          %s490 = sand.u32 %s94, 1
          %s491 = scalar_lea.sflag [#allocation3], %s490
          %s492 = sand.u32 %s94, 1
          %s493 = smul.addr %s492, 16
          %s494 = scalar_lea.vmem [#allocation2], %s493
          %495 = dma.done %s491, 256
        $region44: #{gegenbauer_kan_layer.1} parent=39 // pred_fallthru
          _
      $region40: #{gegenbauer_kan_layer.1} parent=5 // pred_fallthru
        _
    $region6: #{gegenbauer_kan_layer.1} parent=1 // loop_footer
      %s16 = sadd.s32 1, %s12
    $region7: #{gegenbauer_kan_layer.1} parent=1 // loop_footer_branch
      %11 = sbr.rel target = $region3
    $region8: #{gegenbauer_kan_layer.1} parent=1 // loop_exit
      _
    %496 = vsyncpa [#allocation3], 1
    %s497 = scalar_lea.sflag [#allocation3], 1
    %498 = vsyncpa %s497, 1

</llo_original>
